<compile_context>
chip_gen: v6e
topology: v6e:2x2x1
jax: 0.10.0
libtpu: 0.0.40
codegen_flags: <defaults>
</compile_context>

<pallas_src>
import jax
import jax.numpy as jnp
from jax.experimental import pallas as pl
from jax.experimental.pallas import tpu as pltpu


def _round_up(x, m):
    return ((x + m - 1) // m) * m


# ---------------------------------------------------------------------------
# Pallas kernel: 1x1 Conv1d bottleneck == tiled matmul + bias broadcast
# ---------------------------------------------------------------------------
def _bottleneck_kernel(h_ref, w_ref, b_ref, o_ref):
    # h_ref: (tm, D)  f32 tile of flattened hidden states
    # w_ref: (D, N)   bf16 full projection matrix (conv weight transposed)
    # b_ref: (1, N)   f32 bias row
    # o_ref: (tm, N)  f32 output tile
    # In-kernel bf16 cast: VALU has huge slack (kernel is HBM-bound), and this
    # avoids a separate convert pass over the activations in HBM.
    h_bf = h_ref[...].astype(jnp.bfloat16)
    acc = jnp.dot(h_bf, w_ref[...], preferred_element_type=jnp.float32)
    o_ref[...] = (acc + b_ref[...]).astype(o_ref.dtype)


def bottleneck_conv1x1(hidden, weight, bias, *, tm=1024):
    """hidden: (B, L, D); weight: (out_dim, D); bias: (out_dim,).

    Returns (B, L, out_dim) float32, matching
    Conv1d(D, out_dim, 1)(hidden.permute(0,2,1)).permute(0,2,1) in PyTorch
    (up to bf16 rounding of the matmul operands).
    """
    B, L, D = hidden.shape
    out_dim = weight.shape[0]
    M = B * L

    # Row tile: as large as requested, but
    #  * capped so the single "parallel" grid axis has >= 2 steps whenever M
    #    allows it (v7x has 2 TensorCores; a 1-step grid idles half the chip),
    #  * rounded to the f32 sublane pack of 8 (BlockSpec (8,128) rule).
    if M >= 8:
        tm_eff = max(8, min(tm, _round_up(pl.cdiv(M, 2), 8)))
    else:
        tm_eff = M  # block extent == full array extent is always legal
    grid = (pl.cdiv(M, tm_eff),)

    # No wrapper-side padding or output slicing: Pallas masks the ragged last
    # tile on store, and garbage rows in the last input block only feed rows
    # that are masked out of the (M, out_dim) output.
    h2 = hidden.reshape(M, D)                          # contiguous reshape, stays f32
    w_t = weight.T.astype(jnp.bfloat16)                # (D, out_dim), one-time tiny cast
    b2 = bias.reshape(1, out_dim).astype(jnp.float32)  # (1, out_dim)

    cost = pl.CostEstimate(
        flops=2 * M * D * out_dim,
        transcendentals=0,
        bytes_accessed=(M * D * 4                 # f32 activations in
                        + D * out_dim * 2         # bf16 weight in
                        + out_dim * 4             # f32 bias in
                        + M * out_dim * 4),       # f32 output out
    )

    out2 = pl.pallas_call(
        _bottleneck_kernel,
        # Output dtype pinned to f32 (like the PyTorch Conv1d) regardless of
        # the hidden dtype a caller passes in.
        out_shape=jax.ShapeDtypeStruct((M, out_dim), jnp.float32),
        grid_spec=pltpu.PrefetchScalarGridSpec(
            num_scalar_prefetch=0,
            grid=grid,
            in_specs=[
                pl.BlockSpec((tm_eff, D), lambda i: (i, 0)),     # hidden row tile
                pl.BlockSpec((D, out_dim), lambda i: (0, 0)),    # full weight (DMA'd once)
                pl.BlockSpec((1, out_dim), lambda i: (0, 0)),    # bias row (DMA'd once)
            ],
            out_specs=pl.BlockSpec((tm_eff, out_dim), lambda i: (i, 0)),
        ),
        compiler_params=pltpu.CompilerParams(
            dimension_semantics=("parallel",),
            # Safe on every generation: required on v5e (16 MiB scoped default),
            # within v7x's 64 MiB physical with double-buffering headroom.
            vmem_limit_bytes=32 * 1024 * 1024,
        ),
        cost_estimate=cost,
    )(h2, w_t, b2)

    return out2.reshape(B, L, out_dim)


# ---------------------------------------------------------------------------
# ProteinEncoder forward (synthetic backbone + Pallas bottleneck)
# ---------------------------------------------------------------------------
class ProteinEncoderPallas:
    def __init__(self, key, vocab_size=33, embed_dim=64, out_dim=256):
        k_emb, k_w, k_b = jax.random.split(key, 3)
        # TODO(synk): pretrained ESM2 transformer backbone (EsmModel.from_pretrained)
        # has no in-script equivalent; replaced by a deterministic embedding stand-in.
        self.embedding = jax.random.normal(k_emb, (vocab_size, embed_dim),
                                           dtype=jnp.float32) * 0.02
        # nn.Conv1d(embed_dim, out_dim, 1): weight (out_dim, embed_dim, 1), bias (out_dim,)
        self.conv_w = jax.random.normal(k_w, (out_dim, embed_dim),
                                        dtype=jnp.float32) * (1.0 / embed_dim ** 0.5)
        self.conv_b = jax.random.normal(k_b, (out_dim,), dtype=jnp.float32) * 0.01

    def __call__(self, x):
        input_ids = x["protein_sequence"]["input_ids"]              # (B, L) int32
        attention_mask = x["protein_sequence"]["attention_mask"]    # (B, L) int32
        del attention_mask  # TODO(synk): mask only affects the (untranslated) attention.
        # Synthetic "last_hidden_state" (B, L, D) -- glue (plain JAX gather).
        hidden = jnp.take(self.embedding, input_ids, axis=0)
        # Hot path: 1x1 conv bottleneck in Pallas.
        return bottleneck_conv1x1(hidden, self.conv_w, self.conv_b)


if __name__ == "__main__":
    key = jax.random.PRNGKey(0)
    k_model, k_ids = jax.random.split(key)

    B, L, D, OUT = 2, 8, 64, 256
    enc = ProteinEncoderPallas(k_model, vocab_size=33, embed_dim=D, out_dim=OUT)

    input_ids = jax.random.randint(k_ids, (B, L), 0, 33, dtype=jnp.int32)
    attention_mask = jnp.ones((B, L), dtype=jnp.int32)
    x = {"protein_sequence": {"input_ids": input_ids,
                              "attention_mask": attention_mask}}

    out = jax.block_until_ready(enc(x))
    assert out.shape == (B, L, OUT), out.shape
    assert out.dtype == jnp.float32, out.dtype

    # Numerical check vs. plain-JAX reference of the same math.
    hidden = jnp.take(enc.embedding, input_ids, axis=0)

    # Reference with the same bf16 operand rounding (tight tolerance).
    h_bf = hidden.astype(jnp.bfloat16).astype(jnp.float32)
    w_bf = enc.conv_w.astype(jnp.bfloat16).astype(jnp.float32)
    ref_bf = jnp.einsum("bld,od->blo", h_bf, w_bf) + enc.conv_b
    assert jnp.allclose(out, ref_bf, atol=1e-4, rtol=1e-3), \
        float(jnp.max(jnp.abs(out - ref_bf)))

    # Full-f32 reference (loose tolerance to cover bf16 operand rounding).
    ref_f32 = jnp.einsum("bld,od->blo", hidden, enc.conv_w) + enc.conv_b
    assert jnp.allclose(out, ref_f32, atol=2e-2, rtol=2e-2)

    print("KERNEL_OK")
</pallas_src>

<mosaic_0001>
module attributes {stable_mosaic.version = 11 : i64} {
  func.func @_bottleneck_kernel(%arg0: i32, %arg1: memref<8x64xf32, #tpu.memory_space<vmem>>, %arg2: memref<64x256xbf16, #tpu.memory_space<vmem>>, %arg3: memref<1x256xf32, #tpu.memory_space<vmem>>, %arg4: memref<8x256xf32, #tpu.memory_space<vmem>>) attributes {dimension_semantics = [#tpu.dimension_semantics<parallel>], iteration_bounds = array<i64: 2>, scalar_prefetch = 0 : i64, scratch_operands = 0 : i64, tpu.core_type = #tpu.core_type<tc>, window_params = [{transform_indices = @transform_0, window_bounds = array<i64: 8, 64>}, {pipeline_mode = #tpu.pipeline_mode<synchronous>, transform_indices = @transform_1, window_bounds = array<i64: 64, 256>}, {pipeline_mode = #tpu.pipeline_mode<synchronous>, transform_indices = @transform_2, window_bounds = array<i64: 1, 256>}, {transform_indices = @transform_3, window_bounds = array<i64: 8, 256>}]} {
    %c0 = arith.constant 0 : index
    %c0_0 = arith.constant 0 : index
    %0 = vector.load %arg1[%c0, %c0_0] : memref<8x64xf32, #tpu.memory_space<vmem>>, vector<8x64xf32>
    %1 = arith.truncf %0 : vector<8x64xf32> to vector<8x64xbf16>
    %c0_1 = arith.constant 0 : index
    %c0_2 = arith.constant 0 : index
    %2 = vector.load %arg2[%c0_1, %c0_2] : memref<64x256xbf16, #tpu.memory_space<vmem>>, vector<64x256xbf16>
    %cst = arith.constant dense<0.000000e+00> : vector<8x256xf32>
    %3 = tpu.matmul %1, %2, %cst {dimension_numbers = #tpu.dot_dimension_numbers<[1], [0], [0], [1], [0, 0, 1, 1], [], []>} : vector<8x64xbf16>, vector<64x256xbf16>, vector<8x256xf32> -> vector<8x256xf32>
    %c0_3 = arith.constant 0 : index
    %c0_4 = arith.constant 0 : index
    %4 = vector.load %arg3[%c0_3, %c0_4] : memref<1x256xf32, #tpu.memory_space<vmem>>, vector<1x256xf32>
    %5 = vector.broadcast %4 : vector<1x256xf32> to vector<8x256xf32>
    %6 = arith.addf %3, %5 : vector<8x256xf32>
    %c0_5 = arith.constant 0 : index
    %c0_6 = arith.constant 0 : index
    %7 = vector.load %arg4[%c0_5, %c0_6] : memref<8x256xf32, #tpu.memory_space<vmem>>, vector<8x256xf32>
    tpu.vector_store %arg4[%c0_5, %c0_6], %6 {strides = array<i32>} : memref<8x256xf32, #tpu.memory_space<vmem>>, vector<8x256xf32>,
    return
  }
  func.func @transform_0(%arg0: i32) -> (i32, i32) {
    %c0_i32 = arith.constant 0 : i32
    %c0_i32_0 = arith.constant 0 : i32
    return %arg0, %c0_i32 : i32, i32
  }
  func.func @transform_1(%arg0: i32) -> (i32, i32) {
    %c0_i32 = arith.constant 0 : i32
    %c0_i32_0 = arith.constant 0 : i32
    %c0_i32_1 = arith.constant 0 : i32
    return %c0_i32, %c0_i32_0 : i32, i32
  }
  func.func @transform_2(%arg0: i32) -> (i32, i32) {
    %c0_i32 = arith.constant 0 : i32
    %c0_i32_0 = arith.constant 0 : i32
    %c0_i32_1 = arith.constant 0 : i32
    return %c0_i32, %c0_i32_0 : i32, i32
  }
  func.func @transform_3(%arg0: i32) -> (i32, i32) {
    %c0_i32 = arith.constant 0 : i32
    %c0_i32_0 = arith.constant 0 : i32
    return %arg0, %c0_i32 : i32, i32
  }
}

</mosaic_0001>

<llo_original>
// kernel: tpu_custom_call.1
$region0: #{tpu_custom_call.1}
  #allocation0 [shape = 'u32[]', space=smem, size = 0x4, offset = 0x4, fixed_abs, tag = 'smem constant byte address 0x4 - core index']
  #allocation1 [shape = 'u32[144,128]{1,0:T(1,128)}', space=vmem, size = 0x12000, scoped, tag = 'internal scratch']
  %s0 = inlined_call_operand.hbm [shape: f32[16,64], index: 0, kind: input, shape index: {}]
  %s1 = inlined_call_operand.hbm [shape: bf16[64,256], index: 1, kind: input, shape index: {}]
  %s2 = inlined_call_operand.vmem [shape: f32[1,256], index: 2, kind: input, shape index: {}]
  %s3 = inlined_call_operand.hbm [shape: f32[16,256], index: 3, kind: output, shape index: {}]
  %s4 = sld [smem:[#allocation0]]
  $region53: #{tpu_custom_call.1} parent=0
    _
  %s6 = ssub.s32 1, %s4
  %s7 = scalar_select 0, %s6, %s4
  $region1: #{tpu_custom_call.1} parent=0
    #allocation2 [shape = 'u8[8192]{0}', space=vmem, size = 0x2000, scoped, tag = 'input window, operand 0']
    #allocation3 [shape = 's32[2]{0}', space=sflag, size = 0x8, scoped, tag = 'scoped memory for tpu_custom_call.1']
    #allocation4 [shape = 's32[2]{0}', space=sflag, size = 0x8, scoped, tag = 'scoped memory for tpu_custom_call.1']
    #allocation5 [shape = 'u8[32768]{0}', space=vmem, size = 0x8000, scoped, tag = 'input window, operand 1, single buffered']
    #allocation6 [shape = 's32[1]{0}', space=sflag, size = 0x4, scoped, tag = 'scoped memory for tpu_custom_call.1']
    #allocation7 [shape = 'u8[16384]{0}', space=vmem, size = 0x4000, scoped, tag = 'output window, operand 0']
    %8 = vsyncpa [#allocation3], 0
    %s9 = scalar_lea.sflag [#allocation3], 1
    %10 = vsyncpa %s9, 0
    %11 = vsyncpa [#allocation6], 0
    %12 = vsyncpa [#allocation4], 0
    %s13 = scalar_lea.sflag [#allocation4], 1
    %14 = vsyncpa %s13, 0
    loop: start=0, step=1, limit=4
    $region2: #{tpu_custom_call.1} parent=1 // loop_pre_header
      _
    $region3: #{tpu_custom_call.1} parent=1 // loop_header
      %s16 = sphi 0, %s20
      %p17 = scmp.ge.s32.totalorder %s16, 4
      %s26 = sphi 0, %s28
      %s29 = sphi 0, %s26
      %s30 = sphi 0, %s29
      %s46 = sphi 0, %s30
      %s50 = sphi 0, %s50
      %s52 = sphi 0, %s50
      %s53 = sphi 0, %s52
      %s67 = sphi 0, %s53
      %s71 = sphi 0, %s71
      %s73 = sphi 0, %s71
      %s74 = sphi 0, %s73
      %s88 = sphi 0, %s74
      %s94 = sphi 0, %s96
      %s97 = sphi 0, %s94
      %s98 = sphi 0, %s97
      %s114 = sphi 0, %s98
    $region4: #{tpu_custom_call.1} parent=1 // loop_header_branch
      %19 = sbr.rel (%p17) target = $region8
    $region5: #{tpu_custom_call.1} parent=1 // loop_body
      %s21 = ssub.s32 %s16, 1
      %s22 = ssub.s32 %s16, 2
      %s23 = sadd.s32 %s16, 1
      %s24 = ssub.s32 %s16, %s23
      %p25 = scmp.eq.s32.totalorder %s24, 0
      %s27 = sadd.s32 %s26, 1
      %s28 = scalar_select %p25, %s26, %s27
      %p31 = pneg %p25
      %p32 = scmp.eq.s32.totalorder %s16, 1
      %p33 = por %p31, %p32
      %p34 = scmp.ne.s32.totalorder %s26, %s29
      %p35 = scmp.eq.s32.totalorder %s16, 0
      %p36 = por %p34, %p35
      %p37 = scmp.ne.s32.totalorder %s26, %s29
      %p38 = scmp.eq.s32.totalorder %s21, 1
      %p39 = por %p37, %p38
      %p40 = scmp.ne.s32.totalorder %s29, %s30
      %p41 = scmp.eq.s32.totalorder %s21, 0
      %p42 = por %p40, %p41
      %p43 = scmp.ne.s32.totalorder %s29, %s30
      %p44 = scmp.eq.s32.totalorder %s22, 1
      %p45 = por %p43, %p44
      %p47 = scmp.ne.s32.totalorder %s30, %s46
      %p48 = scmp.eq.s32.totalorder %s22, 0
      %p49 = por %p47, %p48
      %s51 = sadd.s32 %s50, 1
      %p54 = scmp.eq.s32.totalorder %s16, 1
      %p55 = scmp.ne.s32.totalorder %s50, %s52
      %p56 = scmp.eq.s32.totalorder %s16, 0
      %p57 = por %p55, %p56
      %p58 = scmp.ne.s32.totalorder %s50, %s52
      %p59 = scmp.eq.s32.totalorder %s21, 1
      %p60 = por %p58, %p59
      %p61 = scmp.ne.s32.totalorder %s52, %s53
      %p62 = scmp.eq.s32.totalorder %s21, 0
      %p63 = por %p61, %p62
      %p64 = scmp.ne.s32.totalorder %s52, %s53
      %p65 = scmp.eq.s32.totalorder %s22, 1
      %p66 = por %p64, %p65
      %p68 = scmp.ne.s32.totalorder %s53, %s67
      %p69 = scmp.eq.s32.totalorder %s22, 0
      %p70 = por %p68, %p69
      %s72 = sadd.s32 %s71, 1
      %p75 = scmp.eq.s32.totalorder %s16, 1
      %p76 = scmp.ne.s32.totalorder %s71, %s73
      %p77 = scmp.eq.s32.totalorder %s16, 0
      %p78 = por %p76, %p77
      %p79 = scmp.ne.s32.totalorder %s71, %s73
      %p80 = scmp.eq.s32.totalorder %s21, 1
      %p81 = por %p79, %p80
      %p82 = scmp.ne.s32.totalorder %s73, %s74
      %p83 = scmp.eq.s32.totalorder %s21, 0
      %p84 = por %p82, %p83
      %p85 = scmp.ne.s32.totalorder %s73, %s74
      %p86 = scmp.eq.s32.totalorder %s22, 1
      %p87 = por %p85, %p86
      %p89 = scmp.ne.s32.totalorder %s74, %s88
      %p90 = scmp.eq.s32.totalorder %s22, 0
      %p91 = por %p89, %p90
      %s92 = ssub.s32 %s16, %s23
      %p93 = scmp.eq.s32.totalorder %s92, 0
      %s95 = sadd.s32 %s94, 1
      %s96 = scalar_select %p93, %s94, %s95
      %p99 = pneg %p93
      %p100 = scmp.eq.s32.totalorder %s16, 1
      %p101 = por %p99, %p100
      %p102 = scmp.ne.s32.totalorder %s94, %s97
      %p103 = scmp.eq.s32.totalorder %s16, 0
      %p104 = por %p102, %p103
      %p105 = scmp.ne.s32.totalorder %s94, %s97
      %p106 = scmp.eq.s32.totalorder %s21, 1
      %p107 = por %p105, %p106
      %p108 = scmp.ne.s32.totalorder %s97, %s98
      %p109 = scmp.eq.s32.totalorder %s21, 0
      %p110 = por %p108, %p109
      %p111 = scmp.ne.s32.totalorder %s97, %s98
      %p112 = scmp.eq.s32.totalorder %s22, 1
      %p113 = por %p111, %p112
      %p115 = scmp.ne.s32.totalorder %s98, %s114
      %p116 = scmp.eq.s32.totalorder %s22, 0
      %p117 = por %p115, %p116
      %p118 = scmp.le.s32.totalorder 1, %s16
      %p119 = scmp.lt.s32.totalorder %s16, 3
      %p120 = pnand %p118, %p119
      %p121 = pneg %p120
      // Predicated region
      $region9: #{tpu_custom_call.1} parent=5 // pred_check
        _
      $region10: #{tpu_custom_call.1} parent=5 // pred_check_branch
        %123 = sbr.rel (%p120) target = $region12
      $region11: #{tpu_custom_call.1} parent=5 // pred_region
        %s124 = ssub.s32 %s16, 1
        // Predicated region
        $region13: #{tpu_custom_call.1} parent=11 // pred_check
          %p125 = pneg %p63
        $region14: #{tpu_custom_call.1} parent=11 // pred_check_branch
          %127 = sbr.rel (%p125) target = $region16
        $region15: #{tpu_custom_call.1} parent=11 // pred_region
          %s129 = ssub.s32 1024, 1024
          %130 = vsyncadd [#allocation6], %s129
          %s131 = sshll.u32 [#allocation5], 4
          %s132 = int_to_ptr.vmem [resolvable:$true] %s131
          %137 = dma.hbm_to_vmem [thread:$0]  %s1, 1024, %s132, [#allocation6], 128, 128, 8
        $region16: #{tpu_custom_call.1} parent=11 // pred_fallthru
          _
        // Predicated region
        $region17: #{tpu_custom_call.1} parent=11 // pred_check
          %p138 = pneg %p84
        $region18: #{tpu_custom_call.1} parent=11 // pred_check_branch
          %140 = sbr.rel (%p138) target = $region20
        $region19: #{tpu_custom_call.1} parent=11 // pred_region
          _
        $region20: #{tpu_custom_call.1} parent=11 // pred_fallthru
          _
      $region12: #{tpu_custom_call.1} parent=5 // pred_fallthru
        _
      %p141 = scmp.lt.s32.totalorder %s16, 2
      // Predicated region
      $region21: #{tpu_custom_call.1} parent=5 // pred_check
        %p142 = pneg %p141
      $region22: #{tpu_custom_call.1} parent=5 // pred_check_branch
        %144 = sbr.rel (%p142) target = $region24
      $region23: #{tpu_custom_call.1} parent=5 // pred_region
        // Predicated region
        $region25: #{tpu_custom_call.1} parent=23 // pred_check
          %p145 = pneg %p36
        $region26: #{tpu_custom_call.1} parent=23 // pred_check_branch
          %147 = sbr.rel (%p145) target = $region28
        $region27: #{tpu_custom_call.1} parent=23 // pred_region
          %s148 = sand.u32 %s26, 1
          %s149 = scalar_lea.sflag [#allocation3], %s148
          %s150 = sand.u32 %s26, 1
          %s151 = smul.addr %s150, 8
          %s152 = scalar_lea.vmem [#allocation2], %s151
          %s154 = ssub.s32 128, 128
          %155 = vsyncadd %s149, %s154
          %s156 = smul.addr %s16, 128
          %s157 = scalar_lea.hbm %s0, %s156
          %s159 = sshll.u32 %s152, 4
          %s160 = int_to_ptr.vmem [resolvable:$true] %s159
          %162 = dma.hbm_to_vmem [thread:$0]  %s157, 128, %s160, %s149
        $region28: #{tpu_custom_call.1} parent=23 // pred_fallthru
          _
      $region24: #{tpu_custom_call.1} parent=5 // pred_fallthru
        _
      %p163 = scmp.le.s32.totalorder 1, %s16
      %p164 = scmp.lt.s32.totalorder %s16, 3
      %p165 = pnand %p163, %p164
      %p166 = pneg %p165
      // Predicated region
      $region29: #{tpu_custom_call.1} parent=5 // pred_check
        _
      $region30: #{tpu_custom_call.1} parent=5 // pred_check_branch
        %168 = sbr.rel (%p165) target = $region32
      $region31: #{tpu_custom_call.1} parent=5 // pred_region
        %s169 = ssub.s32 %s16, 1
        %s170 = sand.u32 %s29, 1
        %s171 = scalar_lea.sflag [#allocation3], %s170
        %s172 = sand.u32 %s29, 1
        %s173 = smul.addr %s172, 8
        %s174 = scalar_lea.vmem [#allocation2], %s173
        // Predicated region
        $region33: #{tpu_custom_call.1} parent=31 // pred_check
          %p175 = pneg %p42
        $region34: #{tpu_custom_call.1} parent=31 // pred_check_branch
          %177 = sbr.rel (%p175) target = $region36
        $region35: #{tpu_custom_call.1} parent=31 // pred_region
          %178 = dma.done %s171, 128
        $region36: #{tpu_custom_call.1} parent=31 // pred_fallthru
          _
        // Predicated region
        $region37: #{tpu_custom_call.1} parent=31 // pred_check
          %p179 = pneg %p63
        $region38: #{tpu_custom_call.1} parent=31 // pred_check_branch
          %181 = sbr.rel (%p179) target = $region40
        $region39: #{tpu_custom_call.1} parent=31 // pred_region
          %182 = dma.done [#allocation6], 1024
        $region40: #{tpu_custom_call.1} parent=31 // pred_fallthru
          _
        %s183 = sand.u32 %s29, 1
        %s184 = scalar_lea.sflag [#allocation3], %s183
        %s185 = sand.u32 %s29, 1
        %s186 = smul.addr %s185, 8
        %s187 = scalar_lea.vmem [#allocation2], %s186
        %p188 = pneg %p42
        %p189 = pneg %p39
        %p190 = pneg %p63
        %p191 = pneg %p60
        %p192 = pneg %p84
        %p193 = pneg %p81
        %p194 = pneg %p110
        %p195 = pneg %p107
        %s196 = sand.u32 %s97, 1
        %s197 = scalar_lea.sflag [#allocation4], %s196
        %s198 = sand.u32 %s97, 1
        %s199 = smul.addr %s198, 16
        %s200 = scalar_lea.vmem [#allocation7], %s199
        %v202 = vld [vmem:[%s174] sm:$0xff]
        %v203 = vpack.c.bf16 %v202, %v202
        %v204 = vld [vmem:[#allocation5] sm:$0xff]
        %v205 = vld [vmem:[#allocation5 + $0x8] sm:$0xff]
        %v206 = vld [vmem:[#allocation5 + $0x10] sm:$0xff]
        %v207 = vld [vmem:[#allocation5 + $0x18] sm:$0xff]
        %v208 = vld [vmem:[#allocation5 + $0x20] sm:$0xff]
        %v209 = vld [vmem:[#allocation5 + $0x28] sm:$0xff]
        %v210 = vld [vmem:[#allocation5 + $0x30] sm:$0xff]
        %v211 = vld [vmem:[#allocation5 + $0x38] sm:$0xff]
        %v212 = vld [vmem:[%s2] sm:$0x3]
        %v214 = vlaneseq
        %v215 = vshrl.u32 %v214, 7
        %v216 = vsub.s32 0, %v215
        %v217 = vrot.slane %v212, %v216
        %v218 = vlaneseq
        %v219 = vshrl.u32 %v218, 7
        %v220 = vsub.s32 1, %v219
        %v221 = vrot.slane %v212, %v220
        %v232 = vunpack.c.l.b16 %v204
        %v233 = vunpack.c.h.b16 %v204
        %v234 = vunpack.c.l.b16 %v205
        %v235 = vunpack.c.h.b16 %v205
        %v236 = vunpack.c.l.b16 %v206
        %v237 = vunpack.c.h.b16 %v206
        %v238 = vunpack.c.l.b16 %v207
        %v239 = vunpack.c.h.b16 %v207
        %v240 = vunpack.c.l.b16 %v208
        %v241 = vunpack.c.h.b16 %v208
        %v242 = vunpack.c.l.b16 %v209
        %v243 = vunpack.c.h.b16 %v209
        %v244 = vunpack.c.l.b16 %v210
        %v245 = vunpack.c.h.b16 %v210
        %v246 = vunpack.c.l.b16 %v211
        %v247 = vunpack.c.h.b16 %v211
        %v248 = vpack.c.b16 %v234, %v232
        %v249 = vpack.c.b16 %v235, %v233
        %v250 = vpack.c.b16 %v238, %v236
        %v251 = vpack.c.b16 %v239, %v237
        %v252 = vpack.c.b16 %v242, %v240
        %v253 = vpack.c.b16 %v243, %v241
        %v254 = vpack.c.b16 %v246, %v244
        %v255 = vpack.c.b16 %v247, %v245
        %vm264 = vcmask 523264
        %v266 = vsel %vm264, %v203, 0
        %268 = vmatprep.subr.bf16.mxu0 0
        %269 = vmatpush1.bf16.msra.mxu0 0
        %270 = vmatprep.subr.bf16.mxu0 0
        %271 = vmatpush1.bf16.msra.mxu0 0
        %272 = vmatprep.subr.bf16.mxu0 0
        %273 = vmatpush1.bf16.msra.mxu0 0
        %274 = vmatprep.subr.bf16.mxu0 0
        %275 = vmatpush1.bf16.msra.mxu0 0
        %276 = vmatprep.subr.bf16.mxu0 %v255
        %277 = vmatpush1.bf16.msra.mxu0 %v254
        %278 = vmatprep.subr.bf16.mxu0 %v253
        %279 = vmatpush1.bf16.msra.mxu0 %v252
        %280 = vmatprep.subr.bf16.mxu0 %v251
        %281 = vmatpush1.bf16.msra.mxu0 %v250
        %282 = vmatprep.subr.bf16.mxu0 %v249
        %283 = vmatpush1.bf16.msra.mxu0 %v248
        %284 = vmatprep.subr.bf16.mxu0 0
        %285 = vmatpush2.bf16.msra.mxu0 0
        %286 = vmatprep.subr.bf16.mxu0 0
        %287 = vmatpush2.bf16.msra.mxu0 0
        %288 = vmatprep.subr.bf16.mxu0 0
        %289 = vmatpush2.bf16.msra.mxu0 0
        %290 = vmatprep.subr.bf16.mxu0 0
        %291 = vmatpush2.bf16.msra.mxu0 0
        %292 = vmatprep.subr.bf16.mxu0 0
        %293 = vmatpush2.bf16.msra.mxu0 0
        %294 = vmatprep.subr.bf16.mxu0 0
        %295 = vmatpush2.bf16.msra.mxu0 0
        %296 = vmatprep.subr.bf16.mxu0 0
        %297 = vmatpush2.bf16.msra.mxu0 0
        %298 = vmatprep.subr.bf16.mxu0 0
        %299 = vmatpush2.bf16.msra.mxu0 0
        %300 = vmatprep.mubr.bf16.mxu0 0
        %301 = vmatmul.mubr.bf16.gmra.mxu0 %v266
        %v302 = vpop.f32.mrf.mxu0
        %v303 = vadd.f32 %v217, %v302
        %v304 = vpop.f32.mrf.mxu0
        %v305 = vadd.f32 %v221, %v304
        %v306 = vpop.f32.mrf.mxu0
        %v307 = vpop.f32.mrf.mxu0
        %308 = vdwg.mxu0
        %309 = vst [vmem:[%s200] sm:$0xff] %v303
        %310 = vst [vmem:[%s200 + $0x8] sm:$0xff] %v305
        %s311 = sand.u32 %s97, 1
        %s312 = scalar_lea.sflag [#allocation4], %s311
        %s313 = sand.u32 %s97, 1
        %s314 = smul.addr %s313, 16
        %s315 = scalar_lea.vmem [#allocation7], %s314
        // Predicated region
        $region41: #{tpu_custom_call.1} parent=31 // pred_check
          %p316 = pneg %p107
        $region42: #{tpu_custom_call.1} parent=31 // pred_check_branch
          %318 = sbr.rel (%p316) target = $region44
        $region43: #{tpu_custom_call.1} parent=31 // pred_region
          %s320 = ssub.s32 256, 256
          %321 = vsyncadd %s312, %s320
          %s322 = smul.addr %s21, 2
          %s323 = smul.addr %s322, 128
          %s324 = scalar_lea.hbm %s3, %s323
          %s326 = sshll.u32 %s315, 4
          %s327 = int_to_ptr.vmem [resolvable:$true] %s326
          %329 = dma.vmem_to_hbm [thread:$0]  %s327, 256, %s324, %s312
        $region44: #{tpu_custom_call.1} parent=31 // pred_fallthru
          _
      $region32: #{tpu_custom_call.1} parent=5 // pred_fallthru
        _
      %p330 = scmp.le.s32.totalorder 2, %s16
      // Predicated region
      $region45: #{tpu_custom_call.1} parent=5 // pred_check
        %p331 = pneg %p330
      $region46: #{tpu_custom_call.1} parent=5 // pred_check_branch
        %333 = sbr.rel (%p331) target = $region48
      $region47: #{tpu_custom_call.1} parent=5 // pred_region
        %s334 = ssub.s32 %s16, 2
        // Predicated region
        $region49: #{tpu_custom_call.1} parent=47 // pred_check
          %p335 = pneg %p113
        $region50: #{tpu_custom_call.1} parent=47 // pred_check_branch
          %337 = sbr.rel (%p335) target = $region52
        $region51: #{tpu_custom_call.1} parent=47 // pred_region
          %s338 = sand.u32 %s98, 1
          %s339 = scalar_lea.sflag [#allocation4], %s338
          %s340 = sand.u32 %s98, 1
          %s341 = smul.addr %s340, 16
          %s342 = scalar_lea.vmem [#allocation7], %s341
          %343 = dma.done %s339, 256
        $region52: #{tpu_custom_call.1} parent=47 // pred_fallthru
          _
      $region48: #{tpu_custom_call.1} parent=5 // pred_fallthru
        _
    $region6: #{tpu_custom_call.1} parent=1 // loop_footer
      %s20 = sadd.s32 1, %s16
    $region7: #{tpu_custom_call.1} parent=1 // loop_footer_branch
      %15 = sbr.rel target = $region3
    $region8: #{tpu_custom_call.1} parent=1 // loop_exit
      _
    %344 = vsyncpa [#allocation3], 1
    %s345 = scalar_lea.sflag [#allocation3], 1
    %346 = vsyncpa %s345, 1
    %347 = vsyncpa [#allocation6], 1
    %348 = vsyncpa [#allocation4], 1
    %s349 = scalar_lea.sflag [#allocation4], 1
    %350 = vsyncpa %s349, 1

</llo_original>
